<compile_context>
chip_gen: v6e
topology: v6e:2x2x1
jax: 0.10.0
libtpu: 0.0.40
codegen_flags: <defaults>
</compile_context>

<pallas_src>
import functools

import numpy as np
import jax
import jax.numpy as jnp
from jax.experimental import pallas as pl
from jax.experimental.pallas import tpu as pltpu

FEAT = 32          # feat_dim
NUM_OUT = 3        # Q, K, V branches
# learnable_swish parameters (deterministic init: alpha=1.0, beta=1.702)
ALPHA = 1.0
BETA = 1.702


def _swish(t):
    return ALPHA * t * jax.nn.sigmoid(BETA * t)


# ---------------------------------------------------------------------------
# Fused kernel: lane-packed BatchedResidualMLP + Performer FastAttention.
# One grid step processes G molecules (G * max_n padded rows).
# ---------------------------------------------------------------------------
def _fused_kernel(lens_ref,                                   # SMEM (nb_pad,)
                  x_ref, w1_ref, b1_ref, w2_ref, b2_ref, w3_ref, b3_ref,
                  projqk_ref, o_ref,
                  qp_s, kd_s, kdiag_s, v_s,                   # VMEM scratch
                  *, G, max_n):
    F = x_ref.shape[-1]
    M = qp_s.shape[-1]
    dn = F ** -0.25                                           # data_normalizer
    ratio = M ** -0.5
    eps = 1e-4

    x = x_ref[...]                                            # (G*max_n, F)

    # ---- lane-packed BatchedResidualMLP:  y = [Q | K | V]  (rows, 3F) ----
    h = _swish(x)                                             # shared across branches
    h = jnp.dot(h, w1_ref[...], preferred_element_type=jnp.float32) + b1_ref[...]
    h = _swish(h)
    h = jnp.dot(h, w2_ref[...], preferred_element_type=jnp.float32) + b2_ref[...]
    x3 = jnp.concatenate([x, x, x], axis=-1)                  # repeat_inp skip, lane-packed
    r = _swish(x3 + h)
    y = x3 + jnp.dot(r, w3_ref[...], preferred_element_type=jnp.float32) + b3_ref[...]

    # ---- Performer softmax-kernel features, whole block at once ----
    # [qd | kd] in a single lane-packed matmul; dn is folded into projqk.
    qkd = jnp.dot(y, projqk_ref[...], preferred_element_type=jnp.float32)  # (rows, 2M)
    q = y[:, :F]
    k = y[:, F:2 * F]
    qd = qkd[:, :M]
    q_diag = 0.5 * (dn * dn) * jnp.sum(q * q, axis=-1, keepdims=True)
    q_max = jnp.max(qd, axis=-1, keepdims=True)               # per-row max (is_query=True)
    qp_s[...] = ratio * (jnp.exp(qd - q_diag - q_max) + eps)  # (rows, M)
    kd_s[...] = qkd[:, M:]                                    # (rows, M)
    kdiag_s[...] = 0.5 * (dn * dn) * jnp.sum(k * k, axis=-1, keepdims=True)
    v_s[...] = y[:, 2 * F:]                                   # (rows, F)

    iota_n = jax.lax.broadcasted_iota(jnp.int32, (max_n, 1), 0)
    base = pl.program_id(0) * G

    # ---- per-molecule linear attention (fori_loop over G molecules) ----
    def mol_body(i, carry):
        row = pl.multiple_of(i * max_n, 8)                    # max_n is 8-aligned
        n_i = lens_ref[base + i]                              # atoms in this molecule

        @pl.when(n_i > 0)                                     # skip fully padded molecules
        def _():
            mask_i = (iota_n < n_i).astype(jnp.float32)       # (max_n, 1)
            kd_i = kd_s[pl.ds(row, max_n), :]
            kdiag_i = kdiag_s[pl.ds(row, max_n), :]
            k_max_i = jnp.max(jnp.where(mask_i > 0.0, kd_i, jnp.float32(-1e30)))
            kp_i = (ratio * (jnp.exp(kd_i - kdiag_i - k_max_i) + eps)) * mask_i
            k_sum_i = jnp.sum(kp_i, axis=0, keepdims=True)    # (1, M)

            qp_i = qp_s[pl.ds(row, max_n), :]
            v_i = v_s[pl.ds(row, max_n), :]
            d_i = jnp.maximum(jnp.sum(qp_i * k_sum_i, axis=-1, keepdims=True),
                              jnp.float32(1e-30))

            ctx_i = jax.lax.dot_general(kp_i, v_i, (((0,), (0,)), ((), ())),
                                        preferred_element_type=jnp.float32)   # (M, F)
            o_i = jnp.dot(qp_i, ctx_i, preferred_element_type=jnp.float32)    # (max_n, F)
            o_ref[pl.ds(row, max_n), :] = (
                o_i * pl.reciprocal(d_i, approx=True)).astype(o_ref.dtype)
        return carry

    jax.lax.fori_loop(0, G, mol_body, 0, unroll=(2 if G >= 2 else 1))


# ---------------------------------------------------------------------------
# Wrapper: full NonLocalInteraction.forward
# ---------------------------------------------------------------------------
def non_local_interaction(x_tilde, num_atoms, params, proj, mols_per_block=32):
    num_nodes, f = x_tilde.shape

    # TODO(synk): num_atoms becomes static -> each distinct (num_atoms, max_n)
    # pattern re-traces (same behavior as the original padded formulation); a
    # pl.BoundedSlice / scalar-prefetched-offset variant would avoid this.
    num_atoms = [int(a) for a in num_atoms]
    nb = len(num_atoms)
    max_n = ((max(num_atoms) + 7) // 8) * 8                   # sublane-align rows / molecule
    # molecules per grid step; keep the grid length >= 2 when nb >= 2 so both
    # v7x TensorCores are used (dimension_semantics="parallel").
    if nb > 1:
        G = max(1, min(mols_per_block, (nb + 1) // 2))
    else:
        G = 1
    nb_pad = ((nb + G - 1) // G) * G
    rows = G * max_n

    # ---- lane-pack the three QKV branches of the BatchedResidualMLP ----
    w1, b1, w2, b2, w3, b3 = params
    w1p = jnp.concatenate([w1[i] for i in range(NUM_OUT)], axis=1)        # (F, 3F)
    b1p = jnp.concatenate([b1[i] for i in range(NUM_OUT)], axis=1)        # (1, 3F)
    w2p = jax.scipy.linalg.block_diag(*[w2[i] for i in range(NUM_OUT)])   # (3F, 3F)
    b2p = jnp.concatenate([b2[i] for i in range(NUM_OUT)], axis=1)
    w3p = jax.scipy.linalg.block_diag(*[w3[i] for i in range(NUM_OUT)])
    b3p = jnp.concatenate([b3[i] for i in range(NUM_OUT)], axis=1)

    # ---- Performer projection, lane-packed for [qd | kd] in one matmul ----
    m = proj.shape[0]
    dn = f ** -0.25
    projt = jnp.asarray(proj, jnp.float32).T * dn                         # (F, M), dn folded
    projqk = jnp.zeros((3 * f, 2 * m), jnp.float32)
    projqk = projqk.at[:f, :m].set(projt)                                 # Q lanes -> qd
    projqk = projqk.at[f:2 * f, m:].set(projt)                            # K lanes -> kd

    # ---- pad rows per molecule once (single scatter), flat row-major ----
    mol_idx = np.concatenate([np.full(a, i, np.int32) for i, a in enumerate(num_atoms)])
    pos_idx = np.concatenate([np.arange(a, dtype=np.int32) for a in num_atoms])
    flat_idx = mol_idx * max_n + pos_idx
    x_pad = jnp.zeros((nb_pad * max_n, f), jnp.float32).at[flat_idx].set(
        x_tilde.astype(jnp.float32))
    lens = jnp.asarray(num_atoms + [0] * (nb_pad - nb), dtype=jnp.int32)

    kernel = functools.partial(_fused_kernel, G=G, max_n=max_n)
    const = lambda g, lens_ref: (0, 0)                        # weights: resident across steps

    out_pad = pl.pallas_call(
        kernel,
        out_shape=jax.ShapeDtypeStruct((nb_pad * max_n, f), jnp.float32),
        grid_spec=pltpu.PrefetchScalarGridSpec(
            num_scalar_prefetch=1,
            grid=(nb_pad // G,),
            in_specs=[
                pl.BlockSpec((rows, f), lambda g, lens_ref: (g, 0)),      # x
                pl.BlockSpec((f, 3 * f), const),                          # W1 packed
                pl.BlockSpec((1, 3 * f), const),                          # b1 packed
                pl.BlockSpec((3 * f, 3 * f), const),                      # W2 block-diag
                pl.BlockSpec((1, 3 * f), const),                          # b2 packed
                pl.BlockSpec((3 * f, 3 * f), const),                      # W3 block-diag
                pl.BlockSpec((1, 3 * f), const),                          # b3 packed
                pl.BlockSpec((3 * f, 2 * m), const),                      # [projt*dn | projt*dn]
            ],
            out_specs=pl.BlockSpec((rows, f), lambda g, lens_ref: (g, 0)),
            scratch_shapes=[
                pltpu.VMEM((rows, m), jnp.float32),                       # qp
                pltpu.VMEM((rows, m), jnp.float32),                       # kd
                pltpu.VMEM((rows, 1), jnp.float32),                       # k_diag
                pltpu.VMEM((rows, f), jnp.float32),                       # v
            ],
        ),
        compiler_params=pltpu.CompilerParams(
            dimension_semantics=("parallel",),
        ),
    )(lens, x_pad, w1p, b1p, w2p, b2p, w3p, b3p, projqk)

    return out_pad[flat_idx]                                  # (num_nodes, F)


# ---------------------------------------------------------------------------
# Deterministic parameter construction (performer_pytorch default projection)
# ---------------------------------------------------------------------------
def gaussian_orthogonal_random_matrix(key, nb_rows, nb_cols):
    k_blocks, k_mult = jax.random.split(key)
    n_full = nb_rows // nb_cols
    keys = jax.random.split(k_blocks, n_full + 1)
    blocks = []
    for i in range(n_full):
        g = jax.random.normal(keys[i], (nb_cols, nb_cols), jnp.float32)
        qm, _ = jnp.linalg.qr(g)
        blocks.append(qm.T)
    rem = nb_rows - n_full * nb_cols
    if rem > 0:
        g = jax.random.normal(keys[n_full], (nb_cols, nb_cols), jnp.float32)
        qm, _ = jnp.linalg.qr(g)
        blocks.append(qm.T[:rem])
    final = jnp.concatenate(blocks, axis=0)
    multiplier = jnp.linalg.norm(
        jax.random.normal(k_mult, (nb_rows, nb_cols), jnp.float32), axis=1)
    return multiplier[:, None] * final


# ---------------------------------------------------------------------------
# Pure-JAX reference (same math) for sanity checking the fused kernel
# ---------------------------------------------------------------------------
def reference(x_tilde, num_atoms, params, proj):
    w1, b1, w2, b2, w3, b3 = params
    x3 = jnp.tile(x_tilde[None], (NUM_OUT, 1, 1)).astype(jnp.float32)
    h = _swish(x3)
    h = jnp.einsum('onf,ofg->ong', h, w1) + b1
    h = _swish(h)
    h = jnp.einsum('onf,ofg->ong', h, w2) + b2
    r = x3 + h
    r = _swish(r)
    y = x3 + jnp.einsum('onf,ofg->ong', r, w3) + b3
    Q, K, V = y[0], y[1], y[2]
    f = x_tilde.shape[-1]
    m = proj.shape[0]
    dn = f ** -0.25
    ratio = m ** -0.5
    eps = 1e-4
    outs, start = [], 0
    for a in num_atoms:
        q, k, v = Q[start:start + a], K[start:start + a], V[start:start + a]
        qd = (q * dn) @ proj.T
        kd = (k * dn) @ proj.T
        qdg = 0.5 * dn * dn * jnp.sum(q * q, -1, keepdims=True)
        kdg = 0.5 * dn * dn * jnp.sum(k * k, -1, keepdims=True)
        qp = ratio * (jnp.exp(qd - qdg - jnp.max(qd, -1, keepdims=True)) + eps)
        kp = ratio * (jnp.exp(kd - kdg - jnp.max(kd)) + eps)
        ks = kp.sum(0)
        dinv = 1.0 / (qp @ ks)
        ctx = kp.T @ v
        outs.append((qp @ ctx) * dinv[:, None])
        start += a
    return jnp.concatenate(outs, 0)


if __name__ == "__main__":
    key = jax.random.PRNGKey(0)
    keys = jax.random.split(key, 8)
    std = 1.0 / np.sqrt(FEAT)

    # BatchedResidualMLP parameters (num_out=3); last residual layer weight is zero-init.
    W1 = jax.random.normal(keys[0], (NUM_OUT, FEAT, FEAT), jnp.float32) * std
    b1 = jax.random.normal(keys[1], (NUM_OUT, 1, FEAT), jnp.float32) * 0.1
    W2 = jnp.zeros((NUM_OUT, FEAT, FEAT), jnp.float32)          # zeros_initializer
    b2 = jax.random.normal(keys[2], (NUM_OUT, 1, FEAT), jnp.float32) * 0.1
    W3 = jax.random.normal(keys[3], (NUM_OUT, FEAT, FEAT), jnp.float32) * std
    b3 = jax.random.normal(keys[4], (NUM_OUT, 1, FEAT), jnp.float32) * 0.1
    params = (W1, b1, W2, b2, W3, b3)

    # FastAttention projection matrix (nb_features = dim_heads = FEAT)
    proj = gaussian_orthogonal_random_matrix(keys[5], FEAT, FEAT)

    # Example inputs: 8 nodes split into two molecules of 5 and 3 atoms.
    num_atoms = [5, 3]
    num_nodes = sum(num_atoms)
    x_tilde = jax.random.normal(keys[6], (num_nodes, FEAT), jnp.float32)

    out = non_local_interaction(x_tilde, num_atoms, params, proj)
    out = jax.block_until_ready(out)

    ref = reference(x_tilde, num_atoms, params, proj)
    np.testing.assert_allclose(np.asarray(out), np.asarray(ref), rtol=2e-3, atol=2e-3)

    print("KERNEL_OK")
</pallas_src>

<mosaic_0001>
module attributes {stable_mosaic.version = 11 : i64} {
  func.func @_fused_kernel(%arg0: i32, %arg1: memref<2xi32, #tpu.memory_space<smem>>, %arg2: memref<8x32xf32, #tpu.memory_space<vmem>>, %arg3: memref<32x96xf32, #tpu.memory_space<vmem>>, %arg4: memref<1x96xf32, #tpu.memory_space<vmem>>, %arg5: memref<96x96xf32, #tpu.memory_space<vmem>>, %arg6: memref<1x96xf32, #tpu.memory_space<vmem>>, %arg7: memref<96x96xf32, #tpu.memory_space<vmem>>, %arg8: memref<1x96xf32, #tpu.memory_space<vmem>>, %arg9: memref<96x64xf32, #tpu.memory_space<vmem>>, %arg10: memref<8x32xf32, #tpu.memory_space<vmem>>, %arg11: memref<8x32xf32, #tpu.memory_space<vmem>>, %arg12: memref<8x32xf32, #tpu.memory_space<vmem>>, %arg13: memref<8x1xf32, #tpu.memory_space<vmem>>, %arg14: memref<8x32xf32, #tpu.memory_space<vmem>>) attributes {dimension_semantics = [#tpu.dimension_semantics<parallel>], iteration_bounds = array<i64: 2>, scalar_prefetch = 1 : i64, scratch_operands = 4 : i64, tpu.core_type = #tpu.core_type<tc>, window_params = [{transform_indices = @transform_0, window_bounds = array<i64: 8, 32>}, {pipeline_mode = #tpu.pipeline_mode<synchronous>, transform_indices = @transform_1, window_bounds = array<i64: 32, 96>}, {pipeline_mode = #tpu.pipeline_mode<synchronous>, transform_indices = @transform_2, window_bounds = array<i64: 1, 96>}, {pipeline_mode = #tpu.pipeline_mode<synchronous>, transform_indices = @transform_3, window_bounds = array<i64: 96, 96>}, {pipeline_mode = #tpu.pipeline_mode<synchronous>, transform_indices = @transform_4, window_bounds = array<i64: 1, 96>}, {pipeline_mode = #tpu.pipeline_mode<synchronous>, transform_indices = @transform_5, window_bounds = array<i64: 96, 96>}, {pipeline_mode = #tpu.pipeline_mode<synchronous>, transform_indices = @transform_6, window_bounds = array<i64: 1, 96>}, {pipeline_mode = #tpu.pipeline_mode<synchronous>, transform_indices = @transform_7, window_bounds = array<i64: 96, 64>}, {transform_indices = @transform_8, window_bounds = array<i64: 8, 32>}]} {
    %c0 = arith.constant 0 : index
    %c0_0 = arith.constant 0 : index
    %0 = vector.load %arg2[%c0, %c0_0] : memref<8x32xf32, #tpu.memory_space<vmem>>, vector<8x32xf32>
    %cst = arith.constant 1.000000e+00 : f32
    %1 = vector.broadcast %cst : f32 to vector<8x32xf32>
    %2 = arith.mulf %1, %0 : vector<8x32xf32>
    %cst_1 = arith.constant 1.702000e+00 : f32
    %3 = vector.broadcast %cst_1 : f32 to vector<8x32xf32>
    %4 = arith.mulf %3, %0 : vector<8x32xf32>
    %5 = arith.negf %4 : vector<8x32xf32>
    %6 = math.exp %5 : vector<8x32xf32>
    %cst_2 = arith.constant 1.000000e+00 : f32
    %7 = vector.broadcast %cst_2 : f32 to vector<8x32xf32>
    %8 = arith.addf %7, %6 : vector<8x32xf32>
    %9 = arith.divf %7, %8 : vector<8x32xf32>
    %10 = arith.mulf %2, %9 : vector<8x32xf32>
    %c0_3 = arith.constant 0 : index
    %c0_4 = arith.constant 0 : index
    %11 = vector.load %arg3[%c0_3, %c0_4] : memref<32x96xf32, #tpu.memory_space<vmem>>, vector<32x96xf32>
    %cst_5 = arith.constant dense<0.000000e+00> : vector<8x96xf32>
    %12 = tpu.matmul %10, %11, %cst_5 {dimension_numbers = #tpu.dot_dimension_numbers<[1], [0], [0], [1], [0, 0, 1, 1], [], []>} : vector<8x32xf32>, vector<32x96xf32>, vector<8x96xf32> -> vector<8x96xf32>
    %c0_6 = arith.constant 0 : index
    %c0_7 = arith.constant 0 : index
    %13 = vector.load %arg4[%c0_6, %c0_7] : memref<1x96xf32, #tpu.memory_space<vmem>>, vector<1x96xf32>
    %14 = vector.broadcast %13 : vector<1x96xf32> to vector<8x96xf32>
    %15 = arith.addf %12, %14 : vector<8x96xf32>
    %cst_8 = arith.constant 1.000000e+00 : f32
    %16 = vector.broadcast %cst_8 : f32 to vector<8x96xf32>
    %17 = arith.mulf %16, %15 : vector<8x96xf32>
    %cst_9 = arith.constant 1.702000e+00 : f32
    %18 = vector.broadcast %cst_9 : f32 to vector<8x96xf32>
    %19 = arith.mulf %18, %15 : vector<8x96xf32>
    %20 = arith.negf %19 : vector<8x96xf32>
    %21 = math.exp %20 : vector<8x96xf32>
    %cst_10 = arith.constant 1.000000e+00 : f32
    %22 = vector.broadcast %cst_10 : f32 to vector<8x96xf32>
    %23 = arith.addf %22, %21 : vector<8x96xf32>
    %24 = arith.divf %22, %23 : vector<8x96xf32>
    %25 = arith.mulf %17, %24 : vector<8x96xf32>
    %c0_11 = arith.constant 0 : index
    %c0_12 = arith.constant 0 : index
    %26 = vector.load %arg5[%c0_11, %c0_12] : memref<96x96xf32, #tpu.memory_space<vmem>>, vector<96x96xf32>
    %cst_13 = arith.constant dense<0.000000e+00> : vector<8x96xf32>
    %27 = tpu.matmul %25, %26, %cst_13 {dimension_numbers = #tpu.dot_dimension_numbers<[1], [0], [0], [1], [0, 0, 1, 1], [], []>} : vector<8x96xf32>, vector<96x96xf32>, vector<8x96xf32> -> vector<8x96xf32>
    %c0_14 = arith.constant 0 : index
    %c0_15 = arith.constant 0 : index
    %28 = vector.load %arg6[%c0_14, %c0_15] : memref<1x96xf32, #tpu.memory_space<vmem>>, vector<1x96xf32>
    %29 = vector.broadcast %28 : vector<1x96xf32> to vector<8x96xf32>
    %30 = arith.addf %27, %29 : vector<8x96xf32>
    %31 = tpu.concatenate %0, %0, %0 in 1 : vector<8x32xf32>, vector<8x32xf32>, vector<8x32xf32> -> vector<8x96xf32>
    %32 = arith.addf %31, %30 : vector<8x96xf32>
    %cst_16 = arith.constant 1.000000e+00 : f32
    %33 = vector.broadcast %cst_16 : f32 to vector<8x96xf32>
    %34 = arith.mulf %33, %32 : vector<8x96xf32>
    %cst_17 = arith.constant 1.702000e+00 : f32
    %35 = vector.broadcast %cst_17 : f32 to vector<8x96xf32>
    %36 = arith.mulf %35, %32 : vector<8x96xf32>
    %37 = arith.negf %36 : vector<8x96xf32>
    %38 = math.exp %37 : vector<8x96xf32>
    %cst_18 = arith.constant 1.000000e+00 : f32
    %39 = vector.broadcast %cst_18 : f32 to vector<8x96xf32>
    %40 = arith.addf %39, %38 : vector<8x96xf32>
    %41 = arith.divf %39, %40 : vector<8x96xf32>
    %42 = arith.mulf %34, %41 : vector<8x96xf32>
    %c0_19 = arith.constant 0 : index
    %c0_20 = arith.constant 0 : index
    %43 = vector.load %arg7[%c0_19, %c0_20] : memref<96x96xf32, #tpu.memory_space<vmem>>, vector<96x96xf32>
    %cst_21 = arith.constant dense<0.000000e+00> : vector<8x96xf32>
    %44 = tpu.matmul %42, %43, %cst_21 {dimension_numbers = #tpu.dot_dimension_numbers<[1], [0], [0], [1], [0, 0, 1, 1], [], []>} : vector<8x96xf32>, vector<96x96xf32>, vector<8x96xf32> -> vector<8x96xf32>
    %45 = arith.addf %31, %44 : vector<8x96xf32>
    %c0_22 = arith.constant 0 : index
    %c0_23 = arith.constant 0 : index
    %46 = vector.load %arg8[%c0_22, %c0_23] : memref<1x96xf32, #tpu.memory_space<vmem>>, vector<1x96xf32>
    %47 = vector.broadcast %46 : vector<1x96xf32> to vector<8x96xf32>
    %48 = arith.addf %45, %47 : vector<8x96xf32>
    %c0_24 = arith.constant 0 : index
    %c0_25 = arith.constant 0 : index
    %49 = vector.load %arg9[%c0_24, %c0_25] : memref<96x64xf32, #tpu.memory_space<vmem>>, vector<96x64xf32>
    %cst_26 = arith.constant dense<0.000000e+00> : vector<8x64xf32>
    %50 = tpu.matmul %48, %49, %cst_26 {dimension_numbers = #tpu.dot_dimension_numbers<[1], [0], [0], [1], [0, 0, 1, 1], [], []>} : vector<8x96xf32>, vector<96x64xf32>, vector<8x64xf32> -> vector<8x64xf32>
    %51 = vector.extract_strided_slice %48 {offsets = [0, 0], sizes = [8, 32], strides = [1, 1]} : vector<8x96xf32> to vector<8x32xf32>
    %52 = vector.extract_strided_slice %48 {offsets = [0, 32], sizes = [8, 32], strides = [1, 1]} : vector<8x96xf32> to vector<8x32xf32>
    %53 = vector.extract_strided_slice %50 {offsets = [0, 0], sizes = [8, 32], strides = [1, 1]} : vector<8x64xf32> to vector<8x32xf32>
    %54 = arith.mulf %51, %51 : vector<8x32xf32>
    %cst_27 = arith.constant dense<0.000000e+00> : vector<8xf32>
    %55 = vector.multi_reduction <add>, %54, %cst_27 [1] : vector<8x32xf32> to vector<8xf32>
    %56 = vector.shape_cast %55 : vector<8xf32> to vector<8x1xf32>
    %cst_28 = arith.constant 0.0883883461 : f32
    %57 = vector.broadcast %cst_28 : f32 to vector<8x1xf32>
    %58 = arith.mulf %57, %56 : vector<8x1xf32>
    %cst_29 = arith.constant dense<0xFF800000> : vector<8xf32>
    %59 = vector.multi_reduction <maximumf>, %53, %cst_29 [1] : vector<8x32xf32> to vector<8xf32>
    %60 = vector.shape_cast %59 : vector<8xf32> to vector<8x1xf32>
    %61 = vector.broadcast %58 : vector<8x1xf32> to vector<8x32xf32>
    %62 = arith.subf %53, %61 : vector<8x32xf32>
    %63 = vector.broadcast %60 : vector<8x1xf32> to vector<8x32xf32>
    %64 = arith.subf %62, %63 : vector<8x32xf32>
    %65 = math.exp %64 : vector<8x32xf32>
    %cst_30 = arith.constant 9.99999974E-5 : f32
    %66 = vector.broadcast %cst_30 : f32 to vector<8x32xf32>
    %67 = arith.addf %65, %66 : vector<8x32xf32>
    %cst_31 = arith.constant 0.176776692 : f32
    %68 = vector.broadcast %cst_31 : f32 to vector<8x32xf32>
    %69 = arith.mulf %68, %67 : vector<8x32xf32>
    %c0_32 = arith.constant 0 : index
    %c0_33 = arith.constant 0 : index
    %70 = vector.load %arg11[%c0_32, %c0_33] : memref<8x32xf32, #tpu.memory_space<vmem>>, vector<8x32xf32>
    tpu.vector_store %arg11[%c0_32, %c0_33], %69 {strides = array<i32>} : memref<8x32xf32, #tpu.memory_space<vmem>>, vector<8x32xf32>,
    %71 = vector.extract_strided_slice %50 {offsets = [0, 32], sizes = [8, 32], strides = [1, 1]} : vector<8x64xf32> to vector<8x32xf32>
    %c0_34 = arith.constant 0 : index
    %c0_35 = arith.constant 0 : index
    %72 = vector.load %arg12[%c0_34, %c0_35] : memref<8x32xf32, #tpu.memory_space<vmem>>, vector<8x32xf32>
    tpu.vector_store %arg12[%c0_34, %c0_35], %71 {strides = array<i32>} : memref<8x32xf32, #tpu.memory_space<vmem>>, vector<8x32xf32>,
    %73 = arith.mulf %52, %52 : vector<8x32xf32>
    %cst_36 = arith.constant dense<0.000000e+00> : vector<8xf32>
    %74 = vector.multi_reduction <add>, %73, %cst_36 [1] : vector<8x32xf32> to vector<8xf32>
    %75 = vector.shape_cast %74 : vector<8xf32> to vector<8x1xf32>
    %cst_37 = arith.constant 0.0883883461 : f32
    %76 = vector.broadcast %cst_37 : f32 to vector<8x1xf32>
    %77 = arith.mulf %76, %75 : vector<8x1xf32>
    %c0_38 = arith.constant 0 : index
    %c0_39 = arith.constant 0 : index
    %78 = vector.load %arg13[%c0_38, %c0_39] : memref<8x1xf32, #tpu.memory_space<vmem>>, vector<8x1xf32>
    tpu.vector_store %arg13[%c0_38, %c0_39], %77 {strides = array<i32>} : memref<8x1xf32, #tpu.memory_space<vmem>>, vector<8x1xf32>,
    %79 = vector.extract_strided_slice %48 {offsets = [0, 64], sizes = [8, 32], strides = [1, 1]} : vector<8x96xf32> to vector<8x32xf32>
    %c0_40 = arith.constant 0 : index
    %c0_41 = arith.constant 0 : index
    %80 = vector.load %arg14[%c0_40, %c0_41] : memref<8x32xf32, #tpu.memory_space<vmem>>, vector<8x32xf32>
    tpu.vector_store %arg14[%c0_40, %c0_41], %79 {strides = array<i32>} : memref<8x32xf32, #tpu.memory_space<vmem>>, vector<8x32xf32>,
    %81 = tpu.iota {dimensions = array<i32: 0>} : vector<8x1xi32>
    %c1_i32 = arith.constant 1 : i32
    %82 = arith.muli %arg0, %c1_i32 : i32
    %c0_i32 = arith.constant 0 : i32
    %c8_i32 = arith.constant 8 : i32
    %83 = arith.muli %c0_i32, %c8_i32 : i32
    %84 = tpu.assume_multiple %83, 8 : i32
    %85 = arith.addi %82, %c0_i32 : i32
    %86 = arith.index_cast %85 : i32 to index
    %87 = memref.load %arg1[%86] : memref<2xi32, #tpu.memory_space<smem>>
    %c0_i32_42 = arith.constant 0 : i32
    %88 = arith.cmpi sgt, %87, %c0_i32_42 : i32
    %89 = arith.extui %88 : i1 to i32
    %c0_i32_43 = arith.constant 0 : i32
    %90 = arith.cmpi ne, %89, %c0_i32_43 : i32
    scf.if %90 {
      %91 = vector.broadcast %87 : i32 to vector<8x1xi32>
      %92 = arith.cmpi slt, %81, %91 : vector<8x1xi32>
      %93 = arith.extui %92 : vector<8x1xi1> to vector<8x1xi32>
      %94 = arith.sitofp %93 : vector<8x1xi32> to vector<8x1xf32>
      %95 = arith.index_cast %84 : i32 to index
      %c0_45 = arith.constant 0 : index
      %96 = vector.load %arg12[%95, %c0_45] : memref<8x32xf32, #tpu.memory_space<vmem>>, vector<8x32xf32>
      %97 = arith.index_cast %84 : i32 to index
      %c0_46 = arith.constant 0 : index
      %98 = vector.load %arg13[%97, %c0_46] : memref<8x1xf32, #tpu.memory_space<vmem>>, vector<8x1xf32>
      %cst_47 = arith.constant 0.000000e+00 : f32
      %99 = vector.broadcast %cst_47 : f32 to vector<8x1xf32>
      %100 = arith.cmpf ogt, %94, %99 : vector<8x1xf32>
      %cst_48 = arith.constant -1.000000e+30 : f32
      %101 = vector.shape_cast %100 : vector<8x1xi1> to vector<8x1xi1>
      %102 = vector.broadcast %101 : vector<8x1xi1> to vector<8x32xi1>
      %103 = vector.broadcast %cst_48 : f32 to vector<8x32xf32>
      %104 = arith.select %102, %96, %103 : vector<8x32xi1>, vector<8x32xf32>
      %105 = vector.shape_cast %104 : vector<8x32xf32> to vector<1x8x32xf32>
      %cst_49 = arith.constant dense<0xFF800000> : vector<1xf32>
      %106 = vector.multi_reduction <maximumf>, %105, %cst_49 [1, 2] : vector<1x8x32xf32> to vector<1xf32>
      %107 = vector.shape_cast %106 : vector<1xf32> to vector<1x1x1xf32>
      %108 = vector.extract %107[0, 0, 0] : f32 from vector<1x1x1xf32>
      %109 = vector.broadcast %98 : vector<8x1xf32> to vector<8x32xf32>
      %110 = arith.subf %96, %109 : vector<8x32xf32>
      %111 = vector.broadcast %108 : f32 to vector<8x32xf32>
      %112 = arith.subf %110, %111 : vector<8x32xf32>
      %113 = math.exp %112 : vector<8x32xf32>
      %cst_50 = arith.constant 9.99999974E-5 : f32
      %114 = vector.broadcast %cst_50 : f32 to vector<8x32xf32>
      %115 = arith.addf %113, %114 : vector<8x32xf32>
      %cst_51 = arith.constant 0.176776692 : f32
      %116 = vector.broadcast %cst_51 : f32 to vector<8x32xf32>
      %117 = arith.mulf %116, %115 : vector<8x32xf32>
      %118 = vector.broadcast %94 : vector<8x1xf32> to vector<8x32xf32>
      %119 = arith.mulf %117, %118 : vector<8x32xf32>
      %cst_52 = arith.constant dense<0.000000e+00> : vector<32xf32>
      %120 = vector.multi_reduction <add>, %119, %cst_52 [0] : vector<8x32xf32> to vector<32xf32>
      %121 = vector.shape_cast %120 : vector<32xf32> to vector<1x32xf32>
      %122 = arith.index_cast %84 : i32 to index
      %c0_53 = arith.constant 0 : index
      %123 = vector.load %arg11[%122, %c0_53] : memref<8x32xf32, #tpu.memory_space<vmem>>, vector<8x32xf32>
      %124 = arith.index_cast %84 : i32 to index
      %c0_54 = arith.constant 0 : index
      %125 = vector.load %arg14[%124, %c0_54] : memref<8x32xf32, #tpu.memory_space<vmem>>, vector<8x32xf32>
      %126 = vector.broadcast %121 : vector<1x32xf32> to vector<8x32xf32>
      %127 = arith.mulf %123, %126 : vector<8x32xf32>
      %cst_55 = arith.constant dense<0.000000e+00> : vector<8xf32>
      %128 = vector.multi_reduction <add>, %127, %cst_55 [1] : vector<8x32xf32> to vector<8xf32>
      %129 = vector.shape_cast %128 : vector<8xf32> to vector<8x1xf32>
      %cst_56 = arith.constant 1.000000e-30 : f32
      %130 = vector.broadcast %cst_56 : f32 to vector<8x1xf32>
      %131 = arith.maximumf %129, %130 : vector<8x1xf32>
      %cst_57 = arith.constant dense<0.000000e+00> : vector<32x32xf32>
      %132 = tpu.matmul %119, %125, %cst_57 {dimension_numbers = #tpu.dot_dimension_numbers<[0], [0], [1], [1], [0, 1, 1, 1], [], []>} : vector<8x32xf32>, vector<8x32xf32>, vector<32x32xf32> -> vector<32x32xf32>
      %cst_58 = arith.constant dense<0.000000e+00> : vector<8x32xf32>
      %133 = tpu.matmul %123, %132, %cst_58 {dimension_numbers = #tpu.dot_dimension_numbers<[1], [0], [0], [1], [0, 0, 1, 1], [], []>} : vector<8x32xf32>, vector<32x32xf32>, vector<8x32xf32> -> vector<8x32xf32>
      %134 = tpu.reciprocal %131 {approx = true} : vector<8x1xf32> -> vector<8x1xf32>
      %135 = vector.broadcast %134 : vector<8x1xf32> to vector<8x32xf32>
      %136 = arith.mulf %133, %135 : vector<8x32xf32>
      %137 = arith.index_cast %84 : i32 to index
      %c0_59 = arith.constant 0 : index
      %138 = vector.load %arg10[%137, %c0_59] : memref<8x32xf32, #tpu.memory_space<vmem>>, vector<8x32xf32>
      tpu.vector_store %arg10[%137, %c0_59], %136 {strides = array<i32>} : memref<8x32xf32, #tpu.memory_space<vmem>>, vector<8x32xf32>,
    } else {
    }
    %c1_i32_44 = arith.constant 1 : i32
    return
  }
  func.func @transform_0(%arg0: i32, %arg1: memref<2xi32, #tpu.memory_space<smem>>) -> (i32, i32) {
    %c0_i32 = arith.constant 0 : i32
    %c0_i32_0 = arith.constant 0 : i32
    return %arg0, %c0_i32 : i32, i32
  }
  func.func @transform_1(%arg0: i32, %arg1: memref<2xi32, #tpu.memory_space<smem>>) -> (i32, i32) {
    %c0_i32 = arith.constant 0 : i32
    %c0_i32_0 = arith.constant 0 : i32
    %c0_i32_1 = arith.constant 0 : i32
    return %c0_i32, %c0_i32_0 : i32, i32
  }
  func.func @transform_2(%arg0: i32, %arg1: memref<2xi32, #tpu.memory_space<smem>>) -> (i32, i32) {
    %c0_i32 = arith.constant 0 : i32
    %c0_i32_0 = arith.constant 0 : i32
    %c0_i32_1 = arith.constant 0 : i32
    return %c0_i32, %c0_i32_0 : i32, i32
  }
  func.func @transform_3(%arg0: i32, %arg1: memref<2xi32, #tpu.memory_space<smem>>) -> (i32, i32) {
    %c0_i32 = arith.constant 0 : i32
    %c0_i32_0 = arith.constant 0 : i32
    %c0_i32_1 = arith.constant 0 : i32
    return %c0_i32, %c0_i32_0 : i32, i32
  }
  func.func @transform_4(%arg0: i32, %arg1: memref<2xi32, #tpu.memory_space<smem>>) -> (i32, i32) {
    %c0_i32 = arith.constant 0 : i32
    %c0_i32_0 = arith.constant 0 : i32
    %c0_i32_1 = arith.constant 0 : i32
    return %c0_i32, %c0_i32_0 : i32, i32
  }
  func.func @transform_5(%arg0: i32, %arg1: memref<2xi32, #tpu.memory_space<smem>>) -> (i32, i32) {
    %c0_i32 = arith.constant 0 : i32
    %c0_i32_0 = arith.constant 0 : i32
    %c0_i32_1 = arith.constant 0 : i32
    return %c0_i32, %c0_i32_0 : i32, i32
  }
  func.func @transform_6(%arg0: i32, %arg1: memref<2xi32, #tpu.memory_space<smem>>) -> (i32, i32) {
    %c0_i32 = arith.constant 0 : i32
    %c0_i32_0 = arith.constant 0 : i32
    %c0_i32_1 = arith.constant 0 : i32
    return %c0_i32, %c0_i32_0 : i32, i32
  }
  func.func @transform_7(%arg0: i32, %arg1: memref<2xi32, #tpu.memory_space<smem>>) -> (i32, i32) {
    %c0_i32 = arith.constant 0 : i32
    %c0_i32_0 = arith.constant 0 : i32
    %c0_i32_1 = arith.constant 0 : i32
    return %c0_i32, %c0_i32_0 : i32, i32
  }
  func.func @transform_8(%arg0: i32, %arg1: memref<2xi32, #tpu.memory_space<smem>>) -> (i32, i32) {
    %c0_i32 = arith.constant 0 : i32
    %c0_i32_0 = arith.constant 0 : i32
    return %arg0, %c0_i32 : i32, i32
  }
}

</mosaic_0001>

<llo_original>
// kernel: tpu_custom_call.1
$region0: #{tpu_custom_call.1}
  #allocation0 [shape = 'u32[]', space=smem, size = 0x4, offset = 0x4, fixed_abs, tag = 'smem constant byte address 0x4 - core index']
  #allocation1 [shape = 'u32[144,128]{1,0:T(1,128)}', space=vmem, size = 0x12000, scoped, tag = 'internal scratch']
  #allocation2 [shape = 'f32[8,32]{1,0:T(8,128)}', space=vmem, size = 0x1000, scoped, tag = 'scratch operand']
  #allocation3 [shape = 'f32[8,32]{1,0:T(8,128)}', space=vmem, size = 0x1000, scoped, tag = 'scratch operand']
  #allocation4 [shape = 'f32[8,1]{1,0:T(8,128)}', space=vmem, size = 0x1000, scoped, tag = 'scratch operand']
  #allocation5 [shape = 'f32[8,32]{1,0:T(8,128)}', space=vmem, size = 0x1000, scoped, tag = 'scratch operand']
  #allocation6 [shape = 's32[1]{0}', space=sflag, size = 0x4, scoped, tag = 'scoped memory for tpu_custom_call.1']
  #allocation7 [shape = 'u8[512]{0}', space=smem, size = 0x200, scoped, tag = 'prefetched SMEM operand 0']
  %s0 = inlined_call_operand.vmem [shape: s32[2], index: 0, kind: input, shape index: {}]
  %s1 = inlined_call_operand.vmem [shape: f32[16,32], index: 1, kind: input, shape index: {}]
  %s2 = inlined_call_operand.vmem [shape: f32[32,96], index: 2, kind: input, shape index: {}]
  %s3 = inlined_call_operand.vmem [shape: f32[1,96], index: 3, kind: input, shape index: {}]
  %s4 = inlined_call_operand.vmem [shape: f32[96,96], index: 4, kind: input, shape index: {}]
  %s5 = inlined_call_operand.vmem [shape: f32[1,96], index: 5, kind: input, shape index: {}]
  %s6 = inlined_call_operand.hbm [shape: f32[96,96], index: 6, kind: input, shape index: {}]
  %s7 = inlined_call_operand.vmem [shape: f32[1,96], index: 7, kind: input, shape index: {}]
  %s8 = inlined_call_operand.vmem [shape: f32[96,64], index: 8, kind: input, shape index: {}]
  %s9 = inlined_call_operand.hbm [shape: f32[16,32], index: 9, kind: output, shape index: {}]
  %s10 = sld [smem:[#allocation0]]
  $region73: #{tpu_custom_call.1} parent=0
    _
  %s12 = ssub.s32 1, %s10
  %s13 = scalar_select 0, %s12, %s10
  %s14 = sshll.u32 %s0, 4
  %s15 = int_to_ptr.vmem [resolvable:$true] %s14
  %17 = dma.vmem_to_smem %s15, 16, [#allocation7], [#allocation6]
  %18 = dma.done [#allocation6], 16
  %19 = sfence
  $region1: #{tpu_custom_call.1} parent=0
    #allocation8 [shape = 'u8[49152]{0}', space=vmem, size = 0xc000, scoped, tag = 'input window, operand 6, single buffered']
    #allocation9 [shape = 's32[2]{0}', space=sflag, size = 0x8, scoped, tag = 'scoped memory for tpu_custom_call.1']
    #allocation10 [shape = 's32[2]{0}', space=sflag, size = 0x8, scoped, tag = 'scoped memory for tpu_custom_call.1']
    #allocation11 [shape = 'u8[8192]{0}', space=vmem, size = 0x2000, scoped, tag = 'output window, operand 0']
    %20 = vsyncpa [#allocation9], 0
    %21 = vsyncpa [#allocation10], 0
    %s22 = scalar_lea.sflag [#allocation10], 1
    %23 = vsyncpa %s22, 0
    loop: start=0, step=1, limit=4
    $region2: #{tpu_custom_call.1} parent=1 // loop_pre_header
      _
    $region3: #{tpu_custom_call.1} parent=1 // loop_header
      %s25 = sphi 0, %s29
      %p26 = scmp.ge.s32.totalorder %s25, 4
      %s35 = sphi 0, %s37
      %s38 = sphi 0, %s35
      %s39 = sphi 0, %s38
      %s55 = sphi 0, %s39
      %s59 = sphi 0, %s59
      %s61 = sphi 0, %s59
      %s62 = sphi 0, %s61
      %s76 = sphi 0, %s62
      %s80 = sphi 0, %s80
      %s82 = sphi 0, %s80
      %s83 = sphi 0, %s82
      %s97 = sphi 0, %s83
      %s101 = sphi 0, %s101
      %s103 = sphi 0, %s101
      %s104 = sphi 0, %s103
      %s118 = sphi 0, %s104
      %s122 = sphi 0, %s122
      %s124 = sphi 0, %s122
      %s125 = sphi 0, %s124
      %s139 = sphi 0, %s125
      %s143 = sphi 0, %s143
      %s145 = sphi 0, %s143
      %s146 = sphi 0, %s145
      %s160 = sphi 0, %s146
      %s164 = sphi 0, %s164
      %s166 = sphi 0, %s164
      %s167 = sphi 0, %s166
      %s181 = sphi 0, %s167
      %s185 = sphi 0, %s185
      %s187 = sphi 0, %s185
      %s188 = sphi 0, %s187
      %s202 = sphi 0, %s188
      %s208 = sphi 0, %s210
      %s211 = sphi 0, %s208
      %s212 = sphi 0, %s211
      %s228 = sphi 0, %s212
    $region4: #{tpu_custom_call.1} parent=1 // loop_header_branch
      %28 = sbr.rel (%p26) target = $region8
    $region5: #{tpu_custom_call.1} parent=1 // loop_body
      %s30 = ssub.s32 %s25, 1
      %s31 = ssub.s32 %s25, 2
      %s32 = sadd.s32 %s25, 1
      %s33 = ssub.s32 %s25, %s32
      %p34 = scmp.eq.s32.totalorder %s33, 0
      %s36 = sadd.s32 %s35, 1
      %s37 = scalar_select %p34, %s35, %s36
      %p40 = pneg %p34
      %p41 = scmp.eq.s32.totalorder %s25, 1
      %p42 = por %p40, %p41
      %p43 = scmp.ne.s32.totalorder %s35, %s38
      %p44 = scmp.eq.s32.totalorder %s25, 0
      %p45 = por %p43, %p44
      %p46 = scmp.ne.s32.totalorder %s35, %s38
      %p47 = scmp.eq.s32.totalorder %s30, 1
      %p48 = por %p46, %p47
      %p49 = scmp.ne.s32.totalorder %s38, %s39
      %p50 = scmp.eq.s32.totalorder %s30, 0
      %p51 = por %p49, %p50
      %p52 = scmp.ne.s32.totalorder %s38, %s39
      %p53 = scmp.eq.s32.totalorder %s31, 1
      %p54 = por %p52, %p53
      %p56 = scmp.ne.s32.totalorder %s39, %s55
      %p57 = scmp.eq.s32.totalorder %s31, 0
      %p58 = por %p56, %p57
      %s60 = sadd.s32 %s59, 1
      %p63 = scmp.eq.s32.totalorder %s25, 1
      %p64 = scmp.ne.s32.totalorder %s59, %s61
      %p65 = scmp.eq.s32.totalorder %s25, 0
      %p66 = por %p64, %p65
      %p67 = scmp.ne.s32.totalorder %s59, %s61
      %p68 = scmp.eq.s32.totalorder %s30, 1
      %p69 = por %p67, %p68
      %p70 = scmp.ne.s32.totalorder %s61, %s62
      %p71 = scmp.eq.s32.totalorder %s30, 0
      %p72 = por %p70, %p71
      %p73 = scmp.ne.s32.totalorder %s61, %s62
      %p74 = scmp.eq.s32.totalorder %s31, 1
      %p75 = por %p73, %p74
      %p77 = scmp.ne.s32.totalorder %s62, %s76
      %p78 = scmp.eq.s32.totalorder %s31, 0
      %p79 = por %p77, %p78
      %s81 = sadd.s32 %s80, 1
      %p84 = scmp.eq.s32.totalorder %s25, 1
      %p85 = scmp.ne.s32.totalorder %s80, %s82
      %p86 = scmp.eq.s32.totalorder %s25, 0
      %p87 = por %p85, %p86
      %p88 = scmp.ne.s32.totalorder %s80, %s82
      %p89 = scmp.eq.s32.totalorder %s30, 1
      %p90 = por %p88, %p89
      %p91 = scmp.ne.s32.totalorder %s82, %s83
      %p92 = scmp.eq.s32.totalorder %s30, 0
      %p93 = por %p91, %p92
      %p94 = scmp.ne.s32.totalorder %s82, %s83
      %p95 = scmp.eq.s32.totalorder %s31, 1
      %p96 = por %p94, %p95
      %p98 = scmp.ne.s32.totalorder %s83, %s97
      %p99 = scmp.eq.s32.totalorder %s31, 0
      %p100 = por %p98, %p99
      %s102 = sadd.s32 %s101, 1
      %p105 = scmp.eq.s32.totalorder %s25, 1
      %p106 = scmp.ne.s32.totalorder %s101, %s103
      %p107 = scmp.eq.s32.totalorder %s25, 0
      %p108 = por %p106, %p107
      %p109 = scmp.ne.s32.totalorder %s101, %s103
      %p110 = scmp.eq.s32.totalorder %s30, 1
      %p111 = por %p109, %p110
      %p112 = scmp.ne.s32.totalorder %s103, %s104
      %p113 = scmp.eq.s32.totalorder %s30, 0
      %p114 = por %p112, %p113
      %p115 = scmp.ne.s32.totalorder %s103, %s104
      %p116 = scmp.eq.s32.totalorder %s31, 1
      %p117 = por %p115, %p116
      %p119 = scmp.ne.s32.totalorder %s104, %s118
      %p120 = scmp.eq.s32.totalorder %s31, 0
      %p121 = por %p119, %p120
      %s123 = sadd.s32 %s122, 1
      %p126 = scmp.eq.s32.totalorder %s25, 1
      %p127 = scmp.ne.s32.totalorder %s122, %s124
      %p128 = scmp.eq.s32.totalorder %s25, 0
      %p129 = por %p127, %p128
      %p130 = scmp.ne.s32.totalorder %s122, %s124
      %p131 = scmp.eq.s32.totalorder %s30, 1
      %p132 = por %p130, %p131
      %p133 = scmp.ne.s32.totalorder %s124, %s125
      %p134 = scmp.eq.s32.totalorder %s30, 0
      %p135 = por %p133, %p134
      %p136 = scmp.ne.s32.totalorder %s124, %s125
      %p137 = scmp.eq.s32.totalorder %s31, 1
      %p138 = por %p136, %p137
      %p140 = scmp.ne.s32.totalorder %s125, %s139
      %p141 = scmp.eq.s32.totalorder %s31, 0
      %p142 = por %p140, %p141
      %s144 = sadd.s32 %s143, 1
      %p147 = scmp.eq.s32.totalorder %s25, 1
      %p148 = scmp.ne.s32.totalorder %s143, %s145
      %p149 = scmp.eq.s32.totalorder %s25, 0
      %p150 = por %p148, %p149
      %p151 = scmp.ne.s32.totalorder %s143, %s145
      %p152 = scmp.eq.s32.totalorder %s30, 1
      %p153 = por %p151, %p152
      %p154 = scmp.ne.s32.totalorder %s145, %s146
      %p155 = scmp.eq.s32.totalorder %s30, 0
      %p156 = por %p154, %p155
      %p157 = scmp.ne.s32.totalorder %s145, %s146
      %p158 = scmp.eq.s32.totalorder %s31, 1
      %p159 = por %p157, %p158
      %p161 = scmp.ne.s32.totalorder %s146, %s160
      %p162 = scmp.eq.s32.totalorder %s31, 0
      %p163 = por %p161, %p162
      %s165 = sadd.s32 %s164, 1
      %p168 = scmp.eq.s32.totalorder %s25, 1
      %p169 = scmp.ne.s32.totalorder %s164, %s166
      %p170 = scmp.eq.s32.totalorder %s25, 0
      %p171 = por %p169, %p170
      %p172 = scmp.ne.s32.totalorder %s164, %s166
      %p173 = scmp.eq.s32.totalorder %s30, 1
      %p174 = por %p172, %p173
      %p175 = scmp.ne.s32.totalorder %s166, %s167
      %p176 = scmp.eq.s32.totalorder %s30, 0
      %p177 = por %p175, %p176
      %p178 = scmp.ne.s32.totalorder %s166, %s167
      %p179 = scmp.eq.s32.totalorder %s31, 1
      %p180 = por %p178, %p179
      %p182 = scmp.ne.s32.totalorder %s167, %s181
      %p183 = scmp.eq.s32.totalorder %s31, 0
      %p184 = por %p182, %p183
      %s186 = sadd.s32 %s185, 1
      %p189 = scmp.eq.s32.totalorder %s25, 1
      %p190 = scmp.ne.s32.totalorder %s185, %s187
      %p191 = scmp.eq.s32.totalorder %s25, 0
      %p192 = por %p190, %p191
      %p193 = scmp.ne.s32.totalorder %s185, %s187
      %p194 = scmp.eq.s32.totalorder %s30, 1
      %p195 = por %p193, %p194
      %p196 = scmp.ne.s32.totalorder %s187, %s188
      %p197 = scmp.eq.s32.totalorder %s30, 0
      %p198 = por %p196, %p197
      %p199 = scmp.ne.s32.totalorder %s187, %s188
      %p200 = scmp.eq.s32.totalorder %s31, 1
      %p201 = por %p199, %p200
      %p203 = scmp.ne.s32.totalorder %s188, %s202
      %p204 = scmp.eq.s32.totalorder %s31, 0
      %p205 = por %p203, %p204
      %s206 = ssub.s32 %s25, %s32
      %p207 = scmp.eq.s32.totalorder %s206, 0
      %s209 = sadd.s32 %s208, 1
      %s210 = scalar_select %p207, %s208, %s209
      %p213 = pneg %p207
      %p214 = scmp.eq.s32.totalorder %s25, 1
      %p215 = por %p213, %p214
      %p216 = scmp.ne.s32.totalorder %s208, %s211
      %p217 = scmp.eq.s32.totalorder %s25, 0
      %p218 = por %p216, %p217
      %p219 = scmp.ne.s32.totalorder %s208, %s211
      %p220 = scmp.eq.s32.totalorder %s30, 1
      %p221 = por %p219, %p220
      %p222 = scmp.ne.s32.totalorder %s211, %s212
      %p223 = scmp.eq.s32.totalorder %s30, 0
      %p224 = por %p222, %p223
      %p225 = scmp.ne.s32.totalorder %s211, %s212
      %p226 = scmp.eq.s32.totalorder %s31, 1
      %p227 = por %p225, %p226
      %p229 = scmp.ne.s32.totalorder %s212, %s228
      %p230 = scmp.eq.s32.totalorder %s31, 0
      %p231 = por %p229, %p230
      %p232 = scmp.le.s32.totalorder 1, %s25
      %p233 = scmp.lt.s32.totalorder %s25, 3
      %p234 = pnand %p232, %p233
      %p235 = pneg %p234
      // Predicated region
      $region9: #{tpu_custom_call.1} parent=5 // pred_check
        _
      $region10: #{tpu_custom_call.1} parent=5 // pred_check_branch
        %237 = sbr.rel (%p234) target = $region12
      $region11: #{tpu_custom_call.1} parent=5 // pred_region
        %s238 = ssub.s32 %s25, 1
        // Predicated region
        $region13: #{tpu_custom_call.1} parent=11 // pred_check
          %p239 = pneg %p72
        $region14: #{tpu_custom_call.1} parent=11 // pred_check_branch
          %241 = sbr.rel (%p239) target = $region16
        $region15: #{tpu_custom_call.1} parent=11 // pred_region
          _
        $region16: #{tpu_custom_call.1} parent=11 // pred_fallthru
          _
        // Predicated region
        $region17: #{tpu_custom_call.1} parent=11 // pred_check
          %p242 = pneg %p93
        $region18: #{tpu_custom_call.1} parent=11 // pred_check_branch
          %244 = sbr.rel (%p242) target = $region20
        $region19: #{tpu_custom_call.1} parent=11 // pred_region
          _
        $region20: #{tpu_custom_call.1} parent=11 // pred_fallthru
          _
        // Predicated region
        $region21: #{tpu_custom_call.1} parent=11 // pred_check
          %p245 = pneg %p114
        $region22: #{tpu_custom_call.1} parent=11 // pred_check_branch
          %247 = sbr.rel (%p245) target = $region24
        $region23: #{tpu_custom_call.1} parent=11 // pred_region
          _
        $region24: #{tpu_custom_call.1} parent=11 // pred_fallthru
          _
        // Predicated region
        $region25: #{tpu_custom_call.1} parent=11 // pred_check
          %p248 = pneg %p135
        $region26: #{tpu_custom_call.1} parent=11 // pred_check_branch
          %250 = sbr.rel (%p248) target = $region28
        $region27: #{tpu_custom_call.1} parent=11 // pred_region
          _
        $region28: #{tpu_custom_call.1} parent=11 // pred_fallthru
          _
        // Predicated region
        $region29: #{tpu_custom_call.1} parent=11 // pred_check
          %p251 = pneg %p156
        $region30: #{tpu_custom_call.1} parent=11 // pred_check_branch
          %253 = sbr.rel (%p251) target = $region32
        $region31: #{tpu_custom_call.1} parent=11 // pred_region
          %s255 = ssub.s32 1536, 1536
          %256 = vsyncadd [#allocation9], %s255
          %s257 = sshll.u32 [#allocation8], 4
          %s258 = int_to_ptr.vmem [resolvable:$true] %s257
          %263 = dma.hbm_to_vmem [thread:$0]  %s6, 1536, %s258, [#allocation9], 128, 128, 8
        $region32: #{tpu_custom_call.1} parent=11 // pred_fallthru
          _
        // Predicated region
        $region33: #{tpu_custom_call.1} parent=11 // pred_check
          %p264 = pneg %p177
        $region34: #{tpu_custom_call.1} parent=11 // pred_check_branch
          %266 = sbr.rel (%p264) target = $region36
        $region35: #{tpu_custom_call.1} parent=11 // pred_region
          _
        $region36: #{tpu_custom_call.1} parent=11 // pred_fallthru
          _
        // Predicated region
        $region37: #{tpu_custom_call.1} parent=11 // pred_check
          %p267 = pneg %p198
        $region38: #{tpu_custom_call.1} parent=11 // pred_check_branch
          %269 = sbr.rel (%p267) target = $region40
        $region39: #{tpu_custom_call.1} parent=11 // pred_region
          _
        $region40: #{tpu_custom_call.1} parent=11 // pred_fallthru
          _
      $region12: #{tpu_custom_call.1} parent=5 // pred_fallthru
        _
      %p270 = scmp.lt.s32.totalorder %s25, 2
      // Predicated region
      $region41: #{tpu_custom_call.1} parent=5 // pred_check
        %p271 = pneg %p270
      $region42: #{tpu_custom_call.1} parent=5 // pred_check_branch
        %273 = sbr.rel (%p271) target = $region44
      $region43: #{tpu_custom_call.1} parent=5 // pred_region
        // Predicated region
        $region45: #{tpu_custom_call.1} parent=43 // pred_check
          %p274 = pneg %p45
        $region46: #{tpu_custom_call.1} parent=43 // pred_check_branch
          %276 = sbr.rel (%p274) target = $region48
        $region47: #{tpu_custom_call.1} parent=43 // pred_region
          %p277 = scmp.lt.s32.totalorder %s25, 1
          %s278 = scalar_select %p277, %s25, 1
          %s279 = smul.addr %s278, 8
          %s280 = scalar_lea.vmem %s1, %s279
        $region48: #{tpu_custom_call.1} parent=43 // pred_fallthru
          _
      $region44: #{tpu_custom_call.1} parent=5 // pred_fallthru
        _
      %p281 = scmp.le.s32.totalorder 1, %s25
      %p282 = scmp.lt.s32.totalorder %s25, 3
      %p283 = pnand %p281, %p282
      %p284 = pneg %p283
      // Predicated region
      $region49: #{tpu_custom_call.1} parent=5 // pred_check
        _
      $region50: #{tpu_custom_call.1} parent=5 // pred_check_branch
        %286 = sbr.rel (%p283) target = $region52
      $region51: #{tpu_custom_call.1} parent=5 // pred_region
        %s287 = ssub.s32 %s25, 1
        // Predicated region
        $region53: #{tpu_custom_call.1} parent=51 // pred_check
          %p288 = pneg %p156
        $region54: #{tpu_custom_call.1} parent=51 // pred_check_branch
          %290 = sbr.rel (%p288) target = $region56
        $region55: #{tpu_custom_call.1} parent=51 // pred_region
          %291 = dma.done [#allocation9], 1536
        $region56: #{tpu_custom_call.1} parent=51 // pred_fallthru
          _
        %p292 = scmp.lt.s32.totalorder %s30, 1
        %s293 = scalar_select %p292, %s30, 1
        %s294 = smul.addr %s293, 8
        %s295 = scalar_lea.vmem %s1, %s294
        %p296 = pneg %p51
        %p297 = pneg %p48
        %p298 = pneg %p72
        %p299 = pneg %p69
        %p300 = pneg %p93
        %p301 = pneg %p90
        %p302 = pneg %p114
        %p303 = pneg %p111
        %p304 = pneg %p135
        %p305 = pneg %p132
        %p306 = pneg %p156
        %p307 = pneg %p153
        %p308 = pneg %p177
        %p309 = pneg %p174
        %p310 = pneg %p198
        %p311 = pneg %p195
        %p312 = pneg %p224
        %p313 = pneg %p221
        %s314 = sand.u32 %s211, 1
        %s315 = scalar_lea.sflag [#allocation10], %s314
        %s316 = sand.u32 %s211, 1
        %s317 = smul.addr %s316, 8
        %s318 = scalar_lea.vmem [#allocation11], %s317
        %p319 = scmp.lt.s32.totalorder %s30, 1
        %s320 = scalar_select %p319, %s30, 1
        %s321 = smul.addr %s320, 8
        %s322 = scalar_lea.vmem %s1, %s321
        %v323 = vld [vmem:[%s322] sm:$0xff]
        %v324 = vmul.f32 %v323, 1.702
        %v325 = vxor.u32 %v324, 2147483648
        %v326 = vmul.f32 %v325, 1.442695
        %v327 = vpow.pop %v326
        %v328 = vadd.f32 %v327, 1.0
        %v329 = vrcp.pop %v328
        %v330 = vmul.f32 1.0, %v329
        %v331 = vmul.f32 %v323, %v330
        %v332 = vld [vmem:[%s2] sm:$0xff]
        %v333 = vld [vmem:[%s2 + $0x8] sm:$0xff]
        %v334 = vld [vmem:[%s2 + $0x10] sm:$0xff]
        %v335 = vld [vmem:[%s2 + $0x18] sm:$0xff]
        %v336 = vld [vmem:[%s3] sm:$0x1]
        %v338 = vlaneseq
        %v339 = vshrl.u32 %v338, 7
        %v340 = vsub.s32 0, %v339
        %v341 = vrot.slane %v336, %v340
        %vm343 = vcmask 261120
        %v345 = vsel %vm343, %v331, 0
        %347 = vmatprep.subr.mxu0 0.0
        %348 = vmatpush1.msra.mxu0 0.0
        %349 = vmatprep.subr.mxu0 0.0
        %350 = vmatpush1.msra.mxu0 0.0
        %351 = vmatprep.subr.mxu0 0.0
        %352 = vmatpush1.msra.mxu0 0.0
        %353 = vmatprep.subr.mxu0 0.0
        %354 = vmatpush1.msra.mxu0 0.0
        %355 = vmatprep.subr.mxu0 0.0
        %356 = vmatpush1.msra.mxu0 0.0
        %357 = vmatprep.subr.mxu0 0.0
        %358 = vmatpush1.msra.mxu0 0.0
        %359 = vmatprep.subr.mxu0 0.0
        %360 = vmatpush1.msra.mxu0 0.0
        %361 = vmatprep.subr.mxu0 0.0
        %362 = vmatpush1.msra.mxu0 0.0
        %363 = vmatprep.subr.mxu0 0.0
        %364 = vmatpush1.msra.mxu0 0.0
        %365 = vmatprep.subr.mxu0 0.0
        %366 = vmatpush1.msra.mxu0 0.0
        %367 = vmatprep.subr.mxu0 0.0
        %368 = vmatpush1.msra.mxu0 0.0
        %369 = vmatprep.subr.mxu0 0.0
        %370 = vmatpush1.msra.mxu0 0.0
        %371 = vmatprep.subr.mxu0 0.0
        %372 = vmatpush1.msra.mxu0 %v335
        %373 = vmatprep.subr.mxu0 0.0
        %374 = vmatpush1.msra.mxu0 %v334
        %375 = vmatprep.subr.mxu0 0.0
        %376 = vmatpush1.msra.mxu0 %v333
        %377 = vmatprep.subr.mxu0 0.0
        %378 = vmatpush1.msra.mxu0 %v332
        %379 = vmatprep.subr.mxu0 0.0
        %380 = vmatpush2.msra.mxu0 0.0
        %381 = vmatprep.subr.mxu0 0.0
        %382 = vmatpush2.msra.mxu0 0.0
        %383 = vmatprep.subr.mxu0 0.0
        %384 = vmatpush2.msra.mxu0 0.0
        %385 = vmatprep.subr.mxu0 0.0
        %386 = vmatpush2.msra.mxu0 0.0
        %387 = vmatprep.subr.mxu0 0.0
        %388 = vmatpush2.msra.mxu0 0.0
        %389 = vmatprep.subr.mxu0 0.0
        %390 = vmatpush2.msra.mxu0 0.0
        %391 = vmatprep.subr.mxu0 0.0
        %392 = vmatpush2.msra.mxu0 0.0
        %393 = vmatprep.subr.mxu0 0.0
        %394 = vmatpush2.msra.mxu0 0.0
        %395 = vmatprep.subr.mxu0 0.0
        %396 = vmatpush2.msra.mxu0 0.0
        %397 = vmatprep.subr.mxu0 0.0
        %398 = vmatpush2.msra.mxu0 0.0
        %399 = vmatprep.subr.mxu0 0.0
        %400 = vmatpush2.msra.mxu0 0.0
        %401 = vmatprep.subr.mxu0 0.0
        %402 = vmatpush2.msra.mxu0 0.0
        %403 = vmatprep.subr.mxu0 0.0
        %404 = vmatpush2.msra.mxu0 0.0
        %405 = vmatprep.subr.mxu0 0.0
        %406 = vmatpush2.msra.mxu0 0.0
        %407 = vmatprep.subr.mxu0 0.0
        %408 = vmatpush2.msra.mxu0 0.0
        %409 = vmatprep.subr.mxu0 0.0
        %410 = vmatpush2.msra.mxu0 0.0
        %411 = vmatprep.mubr.f32.mxu0 0.0
        %412 = vmatmul.mubr.f32.gmra.mxu0 %v345
        %v413 = vpop.f32.mrf.mxu0
        %v414 = vadd.f32 %v341, %v413
        %v415 = vpop.f32.mrf.mxu0
        %416 = vdwg.mxu0
        %v417 = vmul.f32 %v414, 1.702
        %v418 = vxor.u32 %v417, 2147483648
        %v419 = vmul.f32 %v418, 1.442695
        %v420 = vpow.pop %v419
        %v421 = vadd.f32 %v420, 1.0
        %v422 = vrcp.pop %v421
        %v423 = vmul.f32 1.0, %v422
        %v424 = vmul.f32 %v414, %v423
        %v425 = vld [vmem:[%s4] sm:$0xff]
        %v426 = vld [vmem:[%s4 + $0x8] sm:$0xff]
        %v427 = vld [vmem:[%s4 + $0x10] sm:$0xff]
        %v428 = vld [vmem:[%s4 + $0x18] sm:$0xff]
        %v429 = vld [vmem:[%s4 + $0x20] sm:$0xff]
        %v430 = vld [vmem:[%s4 + $0x28] sm:$0xff]
        %v431 = vld [vmem:[%s4 + $0x30] sm:$0xff]
        %v432 = vld [vmem:[%s4 + $0x38] sm:$0xff]
        %v433 = vld [vmem:[%s4 + $0x40] sm:$0xff]
        %v434 = vld [vmem:[%s4 + $0x48] sm:$0xff]
        %v435 = vld [vmem:[%s4 + $0x50] sm:$0xff]
        %v436 = vld [vmem:[%s4 + $0x58] sm:$0xff]
        %v437 = vld [vmem:[%s5] sm:$0x1]
        %v439 = vlaneseq
        %v440 = vshrl.u32 %v439, 7
        %v441 = vsub.s32 0, %v440
        %v442 = vrot.slane %v437, %v441
        %vm444 = vcmask 785408
        %v446 = vsel %vm444, %v424, 0
        %448 = vmatprep.subr.mxu0 0.0
        %449 = vmatpush1.msra.mxu0 0.0
        %450 = vmatprep.subr.mxu0 0.0
        %451 = vmatpush1.msra.mxu0 0.0
        %452 = vmatprep.subr.mxu0 0.0
        %453 = vmatpush1.msra.mxu0 0.0
        %454 = vmatprep.subr.mxu0 0.0
        %455 = vmatpush1.msra.mxu0 0.0
        %456 = vmatprep.subr.mxu0 0.0
        %457 = vmatpush1.msra.mxu0 %v436
        %458 = vmatprep.subr.mxu0 0.0
        %459 = vmatpush1.msra.mxu0 %v435
        %460 = vmatprep.subr.mxu0 0.0
        %461 = vmatpush1.msra.mxu0 %v434
        %462 = vmatprep.subr.mxu0 0.0
        %463 = vmatpush1.msra.mxu0 %v433
        %464 = vmatprep.subr.mxu0 0.0
        %465 = vmatpush1.msra.mxu0 %v432
        %466 = vmatprep.subr.mxu0 0.0
        %467 = vmatpush1.msra.mxu0 %v431
        %468 = vmatprep.subr.mxu0 0.0
        %469 = vmatpush1.msra.mxu0 %v430
        %470 = vmatprep.subr.mxu0 0.0
        %471 = vmatpush1.msra.mxu0 %v429
        %472 = vmatprep.subr.mxu0 0.0
        %473 = vmatpush1.msra.mxu0 %v428
        %474 = vmatprep.subr.mxu0 0.0
        %475 = vmatpush1.msra.mxu0 %v427
        %476 = vmatprep.subr.mxu0 0.0
        %477 = vmatpush1.msra.mxu0 %v426
        %478 = vmatprep.subr.mxu0 0.0
        %479 = vmatpush1.msra.mxu0 %v425
        %480 = vmatprep.subr.mxu0 0.0
        %481 = vmatpush2.msra.mxu0 0.0
        %482 = vmatprep.subr.mxu0 0.0
        %483 = vmatpush2.msra.mxu0 0.0
        %484 = vmatprep.subr.mxu0 0.0
        %485 = vmatpush2.msra.mxu0 0.0
        %486 = vmatprep.subr.mxu0 0.0
        %487 = vmatpush2.msra.mxu0 0.0
        %488 = vmatprep.subr.mxu0 0.0
        %489 = vmatpush2.msra.mxu0 0.0
        %490 = vmatprep.subr.mxu0 0.0
        %491 = vmatpush2.msra.mxu0 0.0
        %492 = vmatprep.subr.mxu0 0.0
        %493 = vmatpush2.msra.mxu0 0.0
        %494 = vmatprep.subr.mxu0 0.0
        %495 = vmatpush2.msra.mxu0 0.0
        %496 = vmatprep.subr.mxu0 0.0
        %497 = vmatpush2.msra.mxu0 0.0
        %498 = vmatprep.subr.mxu0 0.0
        %499 = vmatpush2.msra.mxu0 0.0
        %500 = vmatprep.subr.mxu0 0.0
        %501 = vmatpush2.msra.mxu0 0.0
        %502 = vmatprep.subr.mxu0 0.0
        %503 = vmatpush2.msra.mxu0 0.0
        %504 = vmatprep.subr.mxu0 0.0
        %505 = vmatpush2.msra.mxu0 0.0
        %506 = vmatprep.subr.mxu0 0.0
        %507 = vmatpush2.msra.mxu0 0.0
        %508 = vmatprep.subr.mxu0 0.0
        %509 = vmatpush2.msra.mxu0 0.0
        %510 = vmatprep.subr.mxu0 0.0
        %511 = vmatpush2.msra.mxu0 0.0
        %512 = vmatprep.mubr.f32.mxu0 0.0
        %513 = vmatmul.mubr.f32.gmra.mxu0 %v446
        %v514 = vpop.f32.mrf.mxu0
        %v515 = vadd.f32 %v442, %v514
        %v516 = vpop.f32.mrf.mxu0
        %517 = vdwg.mxu0
        %519 = vrot.lane.b32.xlu0 %v323, 32
        %v520 = vpop.permute.xlu0 %519
        %522 = vrot.lane.b32.xlu0 %v323, 64
        %v523 = vpop.permute.xlu0 %522
        %v525 = vsel %vm343, %v323, %v520
        %vm526 = vcmask 523264
        %v527 = vsel %vm526, %v525, %v523
        %v528 = vadd.f32 %v527, %v515
        %v529 = vmul.f32 %v528, 1.702
        %v530 = vxor.u32 %v529, 2147483648
        %v531 = vmul.f32 %v530, 1.442695
        %v532 = vpow.pop %v531
        %v533 = vadd.f32 %v532, 1.0
        %v534 = vrcp.pop %v533
        %v535 = vmul.f32 1.0, %v534
        %v536 = vmul.f32 %v528, %v535
        %v537 = vld [vmem:[#allocation8] sm:$0xff]
        %v538 = vld [vmem:[#allocation8 + $0x8] sm:$0xff]
        %v539 = vld [vmem:[#allocation8 + $0x10] sm:$0xff]
        %v540 = vld [vmem:[#allocation8 + $0x18] sm:$0xff]
        %v541 = vld [vmem:[#allocation8 + $0x20] sm:$0xff]
        %v542 = vld [vmem:[#allocation8 + $0x28] sm:$0xff]
        %v543 = vld [vmem:[#allocation8 + $0x30] sm:$0xff]
        %v544 = vld [vmem:[#allocation8 + $0x38] sm:$0xff]
        %v545 = vld [vmem:[#allocation8 + $0x40] sm:$0xff]
        %v546 = vld [vmem:[#allocation8 + $0x48] sm:$0xff]
        %v547 = vld [vmem:[#allocation8 + $0x50] sm:$0xff]
        %v548 = vld [vmem:[#allocation8 + $0x58] sm:$0xff]
        %v550 = vsel %vm444, %v536, 0
        %552 = vmatprep.subr.mxu0 0.0
        %553 = vmatpush1.msra.mxu0 0.0
        %554 = vmatprep.subr.mxu0 0.0
        %555 = vmatpush1.msra.mxu0 0.0
        %556 = vmatprep.subr.mxu0 0.0
        %557 = vmatpush1.msra.mxu0 0.0
        %558 = vmatprep.subr.mxu0 0.0
        %559 = vmatpush1.msra.mxu0 0.0
        %560 = vmatprep.subr.mxu0 0.0
        %561 = vmatpush1.msra.mxu0 %v548
        %562 = vmatprep.subr.mxu0 0.0
        %563 = vmatpush1.msra.mxu0 %v547
        %564 = vmatprep.subr.mxu0 0.0
        %565 = vmatpush1.msra.mxu0 %v546
        %566 = vmatprep.subr.mxu0 0.0
        %567 = vmatpush1.msra.mxu0 %v545
        %568 = vmatprep.subr.mxu0 0.0
        %569 = vmatpush1.msra.mxu0 %v544
        %570 = vmatprep.subr.mxu0 0.0
        %571 = vmatpush1.msra.mxu0 %v543
        %572 = vmatprep.subr.mxu0 0.0
        %573 = vmatpush1.msra.mxu0 %v542
        %574 = vmatprep.subr.mxu0 0.0
        %575 = vmatpush1.msra.mxu0 %v541
        %576 = vmatprep.subr.mxu0 0.0
        %577 = vmatpush1.msra.mxu0 %v540
        %578 = vmatprep.subr.mxu0 0.0
        %579 = vmatpush1.msra.mxu0 %v539
        %580 = vmatprep.subr.mxu0 0.0
        %581 = vmatpush1.msra.mxu0 %v538
        %582 = vmatprep.subr.mxu0 0.0
        %583 = vmatpush1.msra.mxu0 %v537
        %584 = vmatprep.subr.mxu0 0.0
        %585 = vmatpush2.msra.mxu0 0.0
        %586 = vmatprep.subr.mxu0 0.0
        %587 = vmatpush2.msra.mxu0 0.0
        %588 = vmatprep.subr.mxu0 0.0
        %589 = vmatpush2.msra.mxu0 0.0
        %590 = vmatprep.subr.mxu0 0.0
        %591 = vmatpush2.msra.mxu0 0.0
        %592 = vmatprep.subr.mxu0 0.0
        %593 = vmatpush2.msra.mxu0 0.0
        %594 = vmatprep.subr.mxu0 0.0
        %595 = vmatpush2.msra.mxu0 0.0
        %596 = vmatprep.subr.mxu0 0.0
        %597 = vmatpush2.msra.mxu0 0.0
        %598 = vmatprep.subr.mxu0 0.0
        %599 = vmatpush2.msra.mxu0 0.0
        %600 = vmatprep.subr.mxu0 0.0
        %601 = vmatpush2.msra.mxu0 0.0
        %602 = vmatprep.subr.mxu0 0.0
        %603 = vmatpush2.msra.mxu0 0.0
        %604 = vmatprep.subr.mxu0 0.0
        %605 = vmatpush2.msra.mxu0 0.0
        %606 = vmatprep.subr.mxu0 0.0
        %607 = vmatpush2.msra.mxu0 0.0
        %608 = vmatprep.subr.mxu0 0.0
        %609 = vmatpush2.msra.mxu0 0.0
        %610 = vmatprep.subr.mxu0 0.0
        %611 = vmatpush2.msra.mxu0 0.0
        %612 = vmatprep.subr.mxu0 0.0
        %613 = vmatpush2.msra.mxu0 0.0
        %614 = vmatprep.subr.mxu0 0.0
        %615 = vmatpush2.msra.mxu0 0.0
        %616 = vmatprep.mubr.f32.mxu0 0.0
        %617 = vmatmul.mubr.f32.gmra.mxu0 %v550
        %v618 = vpop.f32.mrf.mxu0
        %v619 = vadd.f32 0.0, %v618
        %v620 = vpop.f32.mrf.mxu0
        %621 = vdwg.mxu0
        %v622 = vadd.f32 %v527, %v619
        %v623 = vld [vmem:[%s7] sm:$0x1]
        %v625 = vlaneseq
        %v626 = vshrl.u32 %v625, 7
        %v627 = vsub.s32 0, %v626
        %v628 = vrot.slane %v623, %v627
        %v630 = vadd.f32 %v622, %v628
        %v631 = vld [vmem:[%s8] sm:$0xff]
        %v632 = vld [vmem:[%s8 + $0x8] sm:$0xff]
        %v633 = vld [vmem:[%s8 + $0x10] sm:$0xff]
        %v634 = vld [vmem:[%s8 + $0x18] sm:$0xff]
        %v635 = vld [vmem:[%s8 + $0x20] sm:$0xff]
        %v636 = vld [vmem:[%s8 + $0x28] sm:$0xff]
        %v637 = vld [vmem:[%s8 + $0x30] sm:$0xff]
        %v638 = vld [vmem:[%s8 + $0x38] sm:$0xff]
        %v639 = vld [vmem:[%s8 + $0x40] sm:$0xff]
        %v640 = vld [vmem:[%s8 + $0x48] sm:$0xff]
        %v641 = vld [vmem:[%s8 + $0x50] sm:$0xff]
        %v642 = vld [vmem:[%s8 + $0x58] sm:$0xff]
        %v644 = vsel %vm444, %v630, 0
        %646 = vmatprep.subr.mxu0 0.0
        %647 = vmatpush1.msra.mxu0 0.0
        %648 = vmatprep.subr.mxu0 0.0
        %649 = vmatpush1.msra.mxu0 0.0
        %650 = vmatprep.subr.mxu0 0.0
        %651 = vmatpush1.msra.mxu0 0.0
        %652 = vmatprep.subr.mxu0 0.0
        %653 = vmatpush1.msra.mxu0 0.0
        %654 = vmatprep.subr.mxu0 0.0
        %655 = vmatpush1.msra.mxu0 %v642
        %656 = vmatprep.subr.mxu0 0.0
        %657 = vmatpush1.msra.mxu0 %v641
        %658 = vmatprep.subr.mxu0 0.0
        %659 = vmatpush1.msra.mxu0 %v640
        %660 = vmatprep.subr.mxu0 0.0
        %661 = vmatpush1.msra.mxu0 %v639
        %662 = vmatprep.subr.mxu0 0.0
        %663 = vmatpush1.msra.mxu0 %v638
        %664 = vmatprep.subr.mxu0 0.0
        %665 = vmatpush1.msra.mxu0 %v637
        %666 = vmatprep.subr.mxu0 0.0
        %667 = vmatpush1.msra.mxu0 %v636
        %668 = vmatprep.subr.mxu0 0.0
        %669 = vmatpush1.msra.mxu0 %v635
        %670 = vmatprep.subr.mxu0 0.0
        %671 = vmatpush1.msra.mxu0 %v634
        %672 = vmatprep.subr.mxu0 0.0
        %673 = vmatpush1.msra.mxu0 %v633
        %674 = vmatprep.subr.mxu0 0.0
        %675 = vmatpush1.msra.mxu0 %v632
        %676 = vmatprep.subr.mxu0 0.0
        %677 = vmatpush1.msra.mxu0 %v631
        %678 = vmatprep.subr.mxu0 0.0
        %679 = vmatpush2.msra.mxu0 0.0
        %680 = vmatprep.subr.mxu0 0.0
        %681 = vmatpush2.msra.mxu0 0.0
        %682 = vmatprep.subr.mxu0 0.0
        %683 = vmatpush2.msra.mxu0 0.0
        %684 = vmatprep.subr.mxu0 0.0
        %685 = vmatpush2.msra.mxu0 0.0
        %686 = vmatprep.subr.mxu0 0.0
        %687 = vmatpush2.msra.mxu0 0.0
        %688 = vmatprep.subr.mxu0 0.0
        %689 = vmatpush2.msra.mxu0 0.0
        %690 = vmatprep.subr.mxu0 0.0
        %691 = vmatpush2.msra.mxu0 0.0
        %692 = vmatprep.subr.mxu0 0.0
        %693 = vmatpush2.msra.mxu0 0.0
        %694 = vmatprep.subr.mxu0 0.0
        %695 = vmatpush2.msra.mxu0 0.0
        %696 = vmatprep.subr.mxu0 0.0
        %697 = vmatpush2.msra.mxu0 0.0
        %698 = vmatprep.subr.mxu0 0.0
        %699 = vmatpush2.msra.mxu0 0.0
        %700 = vmatprep.subr.mxu0 0.0
        %701 = vmatpush2.msra.mxu0 0.0
        %702 = vmatprep.subr.mxu0 0.0
        %703 = vmatpush2.msra.mxu0 0.0
        %704 = vmatprep.subr.mxu0 0.0
        %705 = vmatpush2.msra.mxu0 0.0
        %706 = vmatprep.subr.mxu0 0.0
        %707 = vmatpush2.msra.mxu0 0.0
        %708 = vmatprep.subr.mxu0 0.0
        %709 = vmatpush2.msra.mxu0 0.0
        %710 = vmatprep.mubr.f32.mxu0 0.0
        %711 = vmatmul.mubr.f32.gmra.mxu0 %v644
        %v712 = vpop.f32.mrf.mxu0
        %v713 = vadd.f32 0.0, %v712
        %v714 = vpop.f32.mrf.mxu0
        %715 = vdwg.mxu0
        %v716 = vmul.f32 %v630, %v630
        %v717 = vsel %vm343, %v716, 0.0
        %718 = vadd.xlane.f32.xlu0 %v717
        %v719 = vpop.xlane.xlu0 %718
        %v720 = vmul.f32 %v719, 0.088388346
        %v721 = vsel %vm343, %v713, -inf
        %722 = vmax.xlane.f32.xlu0 %v721
        %v723 = vpop.xlane.xlu0 %722
        %v724 = vsub.f32 %v713, %v720
        %v725 = vsub.f32 %v724, %v723
        %v726 = vmul.f32 %v725, 1.442695
        %v727 = vpow.pop %v726
        %v728 = vadd.f32 %v727, 0.0001
        %v729 = vmul.f32 %v728, 0.17677669
        %730 = vst.msk [vmem:[#allocation2] sm:$0xff] %vm343, %v729
        %732 = vrot.lane.b32.xlu0 %v713, 96
        %v733 = vpop.permute.xlu0 %732
        %735 = vst.msk [vmem:[#allocation3] sm:$0xff] %vm343, %v733
        %737 = vrot.lane.b32.xlu0 %v716, 96
        %v738 = vpop.permute.xlu0 %737
        %v740 = vsel %vm343, %v738, 0.0
        %741 = vadd.xlane.f32.xlu0 %v740
        %v742 = vpop.xlane.xlu0 %741
        %v743 = vmul.f32 %v742, 0.088388346
        %vm744 = vcmask 7168
        %745 = vst.msk [vmem:[#allocation4] sm:$0xff] %vm744, %v743
        %746 = vrot.lane.b32.xlu0 %v630, 64
        %v747 = vpop.permute.xlu0 %746
        %749 = vst.msk [vmem:[#allocation5] sm:$0xff] %vm343, %v747
        %v750 = vlaneseq
        %v751 = vshrl.u32 %v750, 7
        %s752 = sld [smem:[#allocation7 + %s30]]
        %p753 = scmp.gt.s32.totalorder %s752, 0
        // Predicated region
        $region57: #{tpu_custom_call.1} parent=51 // pred_check
          %p754 = pneg %p753
        $region58: #{tpu_custom_call.1} parent=51 // pred_check_branch
          %756 = sbr.rel (%p754) target = $region60
        $region59: #{tpu_custom_call.1} parent=51 // pred_region
          %v757 = vstv %s752
          %vm758 = vcmp.lt.s32.totalorder %v751, %v757
          %v759 = vsel %vm758, 1, 0
          %v760 = vcvt.s32.f32 %v759
          %v761 = vld [vmem:[#allocation3] sm:$0xff]
          %v762 = vld [vmem:[#allocation4] sm:$0xff]
          %vm763 = vcmp.gt.f32.partialorder %v760, 0.0
          %v764 = vsel %vm763, 1, 0
          %vm765 = vcmp.eq.s32.totalorder %v764, 1
          %v766 = vsel %vm765, %v761, -1e+30
          %v767 = vsel %vm343, %v766, -inf
          %768 = vmax.xlane.f32.xlu0 %v767
          %v769 = vpop.xlane.xlu0 %768
          %v770 = vrot.slane %v769, 4
          %v771 = vmax.f32 %v769, %v770
          %v772 = vrot.slane %v771, 2
          %v773 = vmax.f32 %v771, %v772
          %v774 = vrot.slane %v773, 1
          %v775 = vmax.f32 %v773, %v774
          %s776 = vtos %v775
          %778 = vset.pattern.permute.xlu0 0
          %779 = vperm.xlu0 %778, %v762
          %v780 = vpop.permute.xlu0 %779
          %v782 = vsub.f32 %v761, %v780
          %v783 = vstv %s776
          %v784 = vsub.f32 %v782, %v783
          %v785 = vmul.f32 %v784, 1.442695
          %v786 = vpow.pop %v785
          %v787 = vadd.f32 %v786, 0.0001
          %v788 = vmul.f32 %v787, 0.17677669
          %v789 = vmul.f32 %v788, %v760
          %v790 = vsel %vm343, %v789, 0.0
          %v791 = vrot.slane %v790, 4
          %v792 = vadd.f32 %v790, %v791
          %v793 = vrot.slane %v792, 2
          %v794 = vadd.f32 %v792, %v793
          %v795 = vrot.slane %v794, 1
          %v796 = vadd.f32 %v794, %v795
          %v797 = vld [vmem:[#allocation2] sm:$0xff]
          %v798 = vld [vmem:[#allocation5] sm:$0xff]
          %v799 = vmul.f32 %v797, %v796
          %v800 = vsel %vm343, %v799, 0.0
          %801 = vadd.xlane.f32.xlu0 %v800
          %v802 = vpop.xlane.xlu0 %801
          %v803 = vmax.f32 %v802, 1e-30
          %804 = vxpose.xlu0.b32.start [1/16] %v789, 128
          %805 = vxpose.xlu0.b32.cont [2/16] 0.0, 128
          %806 = vxpose.xlu0.b32.cont [3/16] 0.0, 128
          %807 = vxpose.xlu0.b32.cont [4/16] 0.0, 128
          %808 = vxpose.xlu0.b32.cont [5/16] 0.0, 128
          %809 = vxpose.xlu0.b32.cont [6/16] 0.0, 128
          %810 = vxpose.xlu0.b32.cont [7/16] 0.0, 128
          %811 = vxpose.xlu0.b32.cont [8/16] 0.0, 128
          %812 = vxpose.xlu0.b32.cont [9/16] 0.0, 128
          %813 = vxpose.xlu0.b32.cont [10/16] 0.0, 128
          %814 = vxpose.xlu0.b32.cont [11/16] 0.0, 128
          %815 = vxpose.xlu0.b32.cont [12/16] 0.0, 128
          %816 = vxpose.xlu0.b32.cont [13/16] 0.0, 128
          %817 = vxpose.xlu0.b32.cont [14/16] 0.0, 128
          %818 = vxpose.xlu0.b32.cont [15/16] 0.0, 128
          %819 = vxpose.xlu0.b32.end [16/16] 0.0, 128
          %v820 = vpop.trf.xlu0
          %v821 = vpop.trf.xlu0
          %v822 = vpop.trf.xlu0
          %v823 = vpop.trf.xlu0
          %v824 = vpop.trf.xlu0
          %v825 = vpop.trf.xlu0
          %v826 = vpop.trf.xlu0
          %v827 = vpop.trf.xlu0
          %v828 = vpop.trf.xlu0
          %v829 = vpop.trf.xlu0
          %v830 = vpop.trf.xlu0
          %v831 = vpop.trf.xlu0
          %v832 = vpop.trf.xlu0
          %v833 = vpop.trf.xlu0
          %v834 = vpop.trf.xlu0
          %v835 = vpop.trf.xlu0
          %vm836 = vcmask 64512
          %v838 = vsel %vm836, %v820, 0
          %v841 = vsel %vm836, %v821, 0
          %v844 = vsel %vm836, %v822, 0
          %v847 = vsel %vm836, %v823, 0
          %849 = vmatprep.subr.mxu0 0.0
          %850 = vmatpush1.msra.mxu0 0.0
          %851 = vmatprep.subr.mxu0 0.0
          %852 = vmatpush1.msra.mxu0 0.0
          %853 = vmatprep.subr.mxu0 0.0
          %854 = vmatpush1.msra.mxu0 0.0
          %855 = vmatprep.subr.mxu0 0.0
          %856 = vmatpush1.msra.mxu0 0.0
          %857 = vmatprep.subr.mxu0 0.0
          %858 = vmatpush1.msra.mxu0 0.0
          %859 = vmatprep.subr.mxu0 0.0
          %860 = vmatpush1.msra.mxu0 0.0
          %861 = vmatprep.subr.mxu0 0.0
          %862 = vmatpush1.msra.mxu0 0.0
          %863 = vmatprep.subr.mxu0 0.0
          %864 = vmatpush1.msra.mxu0 0.0
          %865 = vmatprep.subr.mxu0 0.0
          %866 = vmatpush1.msra.mxu0 0.0
          %867 = vmatprep.subr.mxu0 0.0
          %868 = vmatpush1.msra.mxu0 0.0
          %869 = vmatprep.subr.mxu0 0.0
          %870 = vmatpush1.msra.mxu0 0.0
          %871 = vmatprep.subr.mxu0 0.0
          %872 = vmatpush1.msra.mxu0 0.0
          %873 = vmatprep.subr.mxu0 0.0
          %874 = vmatpush1.msra.mxu0 0.0
          %875 = vmatprep.subr.mxu0 0.0
          %876 = vmatpush1.msra.mxu0 0.0
          %877 = vmatprep.subr.mxu0 0.0
          %878 = vmatpush1.msra.mxu0 0.0
          %879 = vmatprep.subr.mxu0 0.0
          %880 = vmatpush1.msra.mxu0 %v798
          %881 = vmatprep.subr.mxu0 0.0
          %882 = vmatpush2.msra.mxu0 0.0
          %883 = vmatprep.subr.mxu0 0.0
          %884 = vmatpush2.msra.mxu0 0.0
          %885 = vmatprep.subr.mxu0 0.0
          %886 = vmatpush2.msra.mxu0 0.0
          %887 = vmatprep.subr.mxu0 0.0
          %888 = vmatpush2.msra.mxu0 0.0
          %889 = vmatprep.subr.mxu0 0.0
          %890 = vmatpush2.msra.mxu0 0.0
          %891 = vmatprep.subr.mxu0 0.0
          %892 = vmatpush2.msra.mxu0 0.0
          %893 = vmatprep.subr.mxu0 0.0
          %894 = vmatpush2.msra.mxu0 0.0
          %895 = vmatprep.subr.mxu0 0.0
          %896 = vmatpush2.msra.mxu0 0.0
          %897 = vmatprep.subr.mxu0 0.0
          %898 = vmatpush2.msra.mxu0 0.0
          %899 = vmatprep.subr.mxu0 0.0
          %900 = vmatpush2.msra.mxu0 0.0
          %901 = vmatprep.subr.mxu0 0.0
          %902 = vmatpush2.msra.mxu0 0.0
          %903 = vmatprep.subr.mxu0 0.0
          %904 = vmatpush2.msra.mxu0 0.0
          %905 = vmatprep.subr.mxu0 0.0
          %906 = vmatpush2.msra.mxu0 0.0
          %907 = vmatprep.subr.mxu0 0.0
          %908 = vmatpush2.msra.mxu0 0.0
          %909 = vmatprep.subr.mxu0 0.0
          %910 = vmatpush2.msra.mxu0 0.0
          %911 = vmatprep.subr.mxu0 0.0
          %912 = vmatpush2.msra.mxu0 0.0
          %913 = vmatprep.mubr.f32.mxu0 0.0
          %914 = vmatmul.mubr.f32.gmra.mxu0 %v838
          %v915 = vpop.f32.mrf.mxu0
          %v916 = vadd.f32 0.0, %v915
          %v917 = vpop.f32.mrf.mxu0
          %918 = vmatprep.mubr.f32.mxu0 0.0
          %919 = vmatmul.mubr.f32.gmra.mxu0 %v841
          %v920 = vpop.f32.mrf.mxu0
          %v921 = vadd.f32 0.0, %v920
          %v922 = vpop.f32.mrf.mxu0
          %923 = vmatprep.mubr.f32.mxu0 0.0
          %924 = vmatmul.mubr.f32.gmra.mxu0 %v844
          %v925 = vpop.f32.mrf.mxu0
          %v926 = vadd.f32 0.0, %v925
          %v927 = vpop.f32.mrf.mxu0
          %928 = vmatprep.mubr.f32.mxu0 0.0
          %929 = vmatmul.mubr.f32.gmra.mxu0 %v847
          %v930 = vpop.f32.mrf.mxu0
          %v931 = vadd.f32 0.0, %v930
          %v932 = vpop.f32.mrf.mxu0
          %933 = vdwg.mxu0
          %v935 = vsel %vm343, %v797, 0
          %937 = vmatprep.subr.mxu0 0.0
          %938 = vmatpush1.msra.mxu0 0.0
          %939 = vmatprep.subr.mxu0 0.0
          %940 = vmatpush1.msra.mxu0 0.0
          %941 = vmatprep.subr.mxu0 0.0
          %942 = vmatpush1.msra.mxu0 0.0
          %943 = vmatprep.subr.mxu0 0.0
          %944 = vmatpush1.msra.mxu0 0.0
          %945 = vmatprep.subr.mxu0 0.0
          %946 = vmatpush1.msra.mxu0 0.0
          %947 = vmatprep.subr.mxu0 0.0
          %948 = vmatpush1.msra.mxu0 0.0
          %949 = vmatprep.subr.mxu0 0.0
          %950 = vmatpush1.msra.mxu0 0.0
          %951 = vmatprep.subr.mxu0 0.0
          %952 = vmatpush1.msra.mxu0 0.0
          %953 = vmatprep.subr.mxu0 0.0
          %954 = vmatpush1.msra.mxu0 0.0
          %955 = vmatprep.subr.mxu0 0.0
          %956 = vmatpush1.msra.mxu0 0.0
          %957 = vmatprep.subr.mxu0 0.0
          %958 = vmatpush1.msra.mxu0 0.0
          %959 = vmatprep.subr.mxu0 0.0
          %960 = vmatpush1.msra.mxu0 0.0
          %961 = vmatprep.subr.mxu0 0.0
          %962 = vmatpush1.msra.mxu0 %v931
          %963 = vmatprep.subr.mxu0 0.0
          %964 = vmatpush1.msra.mxu0 %v926
          %965 = vmatprep.subr.mxu0 0.0
          %966 = vmatpush1.msra.mxu0 %v921
          %967 = vmatprep.subr.mxu0 0.0
          %968 = vmatpush1.msra.mxu0 %v916
          %969 = vmatprep.subr.mxu0 0.0
          %970 = vmatpush2.msra.mxu0 0.0
          %971 = vmatprep.subr.mxu0 0.0
          %972 = vmatpush2.msra.mxu0 0.0
          %973 = vmatprep.subr.mxu0 0.0
          %974 = vmatpush2.msra.mxu0 0.0
          %975 = vmatprep.subr.mxu0 0.0
          %976 = vmatpush2.msra.mxu0 0.0
          %977 = vmatprep.subr.mxu0 0.0
          %978 = vmatpush2.msra.mxu0 0.0
          %979 = vmatprep.subr.mxu0 0.0
          %980 = vmatpush2.msra.mxu0 0.0
          %981 = vmatprep.subr.mxu0 0.0
          %982 = vmatpush2.msra.mxu0 0.0
          %983 = vmatprep.subr.mxu0 0.0
          %984 = vmatpush2.msra.mxu0 0.0
          %985 = vmatprep.subr.mxu0 0.0
          %986 = vmatpush2.msra.mxu0 0.0
          %987 = vmatprep.subr.mxu0 0.0
          %988 = vmatpush2.msra.mxu0 0.0
          %989 = vmatprep.subr.mxu0 0.0
          %990 = vmatpush2.msra.mxu0 0.0
          %991 = vmatprep.subr.mxu0 0.0
          %992 = vmatpush2.msra.mxu0 0.0
          %993 = vmatprep.subr.mxu0 0.0
          %994 = vmatpush2.msra.mxu0 0.0
          %995 = vmatprep.subr.mxu0 0.0
          %996 = vmatpush2.msra.mxu0 0.0
          %997 = vmatprep.subr.mxu0 0.0
          %998 = vmatpush2.msra.mxu0 0.0
          %999 = vmatprep.subr.mxu0 0.0
          %1000 = vmatpush2.msra.mxu0 0.0
          %1001 = vmatprep.mubr.f32.mxu0 0.0
          %1002 = vmatmul.mubr.f32.gmra.mxu0 %v935
          %v1003 = vpop.f32.mrf.mxu0
          %v1004 = vadd.f32 0.0, %v1003
          %v1005 = vpop.f32.mrf.mxu0
          %1006 = vdwg.mxu0
          %v1007 = vrcp.pop %v803
          %v1008 = vmul.f32 %v1004, %v1007
          %1009 = vst.msk [vmem:[%s318] sm:$0xff] %vm343, %v1008
        $region60: #{tpu_custom_call.1} parent=51 // pred_fallthru
          _
        %s1010 = sand.u32 %s211, 1
        %s1011 = scalar_lea.sflag [#allocation10], %s1010
        %s1012 = sand.u32 %s211, 1
        %s1013 = smul.addr %s1012, 8
        %s1014 = scalar_lea.vmem [#allocation11], %s1013
        // Predicated region
        $region61: #{tpu_custom_call.1} parent=51 // pred_check
          %p1015 = pneg %p221
        $region62: #{tpu_custom_call.1} parent=51 // pred_check_branch
          %1017 = sbr.rel (%p1015) target = $region64
        $region63: #{tpu_custom_call.1} parent=51 // pred_region
          %s1019 = ssub.s32 128, 128
          %1020 = vsyncadd %s1011, %s1019
          %s1021 = smul.addr %s30, 128
          %s1022 = scalar_lea.hbm %s9, %s1021
          %s1024 = sshll.u32 %s1014, 4
          %s1025 = int_to_ptr.vmem [resolvable:$true] %s1024
          %1027 = dma.vmem_to_hbm [thread:$0]  %s1025, 128, %s1022, %s1011
        $region64: #{tpu_custom_call.1} parent=51 // pred_fallthru
          _
      $region52: #{tpu_custom_call.1} parent=5 // pred_fallthru
        _
      %p1028 = scmp.le.s32.totalorder 2, %s25
      // Predicated region
      $region65: #{tpu_custom_call.1} parent=5 // pred_check
        %p1029 = pneg %p1028
      $region66: #{tpu_custom_call.1} parent=5 // pred_check_branch
        %1031 = sbr.rel (%p1029) target = $region68
      $region67: #{tpu_custom_call.1} parent=5 // pred_region
        %s1032 = ssub.s32 %s25, 2
        // Predicated region
        $region69: #{tpu_custom_call.1} parent=67 // pred_check
          %p1033 = pneg %p227
        $region70: #{tpu_custom_call.1} parent=67 // pred_check_branch
          %1035 = sbr.rel (%p1033) target = $region72
        $region71: #{tpu_custom_call.1} parent=67 // pred_region
          %s1036 = sand.u32 %s212, 1
          %s1037 = scalar_lea.sflag [#allocation10], %s1036
          %s1038 = sand.u32 %s212, 1
          %s1039 = smul.addr %s1038, 8
          %s1040 = scalar_lea.vmem [#allocation11], %s1039
          %1041 = dma.done %s1037, 128
        $region72: #{tpu_custom_call.1} parent=67 // pred_fallthru
          _
      $region68: #{tpu_custom_call.1} parent=5 // pred_fallthru
        _
    $region6: #{tpu_custom_call.1} parent=1 // loop_footer
      %s29 = sadd.s32 1, %s25
    $region7: #{tpu_custom_call.1} parent=1 // loop_footer_branch
      %24 = sbr.rel target = $region3
    $region8: #{tpu_custom_call.1} parent=1 // loop_exit
      _
    %1042 = vsyncpa [#allocation9], 1
    %s1043 = scalar_lea.sflag [#allocation9], 1
    %1044 = vsyncpa %s1043, 1
    %1045 = vsyncpa [#allocation10], 1
    %s1046 = scalar_lea.sflag [#allocation10], 1
    %1047 = vsyncpa %s1046, 1

</llo_original>
